<compile_context>
chip_gen: v6e
topology: v6e:2x2x1
jax: 0.10.0
libtpu: 0.0.40
codegen_flags: <defaults>
</compile_context>

<pallas_src>
import functools

import jax
import jax.numpy as jnp
from jax.experimental import pallas as pl
from jax.experimental.pallas import tpu as pltpu


def _round_up(x, m):
    return (x + m - 1) // m * m


def _cdiv(a, b):
    return (a + b - 1) // b


# --------------------------------------------------------------------------
# Kernel
# --------------------------------------------------------------------------
def _mlp_kernel(t_ref,
                w1_ref, b1_ref,
                w2_ref, b2_ref,
                w3_ref, b3_ref,
                w4_ref, b4_ref,
                o_ref, *, dim_u, tanh_dtype):
    """Fused 4-layer MLP for one batch tile.

      t_ref : (tile, dim_t)   torch layout, loaded straight from HBM
      wN_ref: (outN_pad, inN_pad)   feature-major, zero-padded (inert padding)
      bN_ref: (outN_pad, 1)
      o_ref : (tile, dim_u)   torch layout, stored straight to HBM
    """
    f32 = jnp.float32

    def act(z):
        if jnp.dtype(tanh_dtype) == jnp.dtype(f32):
            return jnp.tanh(z)
        # v6e/v7x: the single EUP slot is the binding unit here and is
        # bf16-capable -> bf16 tanh ~doubles its throughput.  Dots stay f32.
        return jnp.tanh(z.astype(tanh_dtype)).astype(f32)

    # Layer 1 contracts t's feature dim directly (q @ k.T style dimension
    # numbers), so no transpose of the input tile is needed while all
    # activations stay feature-major: (features, tile) -> batch on lanes,
    # lane-dense vregs for the tanh-heavy middle layers.
    t = t_ref[...]                                              # (tile, dim_t)
    h = jax.lax.dot_general(w1_ref[...], t, (((1,), (1,)), ((), ())),
                            preferred_element_type=f32)          # (h1_p, tile)
    h = act(h + b1_ref[...])
    h = act(jnp.dot(w2_ref[...], h, preferred_element_type=f32) + b2_ref[...])
    h = act(jnp.dot(w3_ref[...], h, preferred_element_type=f32) + b3_ref[...])
    o = jnp.dot(w4_ref[...], h, preferred_element_type=f32) + b4_ref[...]  # (du_p, tile)

    # (du_p, tile) -> (tile, du_p): one cheap XLU transpose per tile, then
    # store the first dim_u lanes straight into the [B, dim_u] output.  No
    # wrapper-side slice/transpose HBM round trips.
    o_ref[...] = o.T[:, :dim_u].astype(o_ref.dtype)


# --------------------------------------------------------------------------
# Tiling heuristic
# --------------------------------------------------------------------------
def _choose_batch_tile(batch):
    # Big tiles amortize the ~0.35us per-grid-step overhead and the four MXU
    # weight pushes per step; per-tile VMEM footprint at 4096 is ~12 MiB,
    # comfortably under even v7x's 32 MiB scoped default.  Keep the grid
    # length even (>= 2) so both v7x TensorCores get equal work.
    cap = 4096
    steps = max(2, _cdiv(batch, cap))
    if steps % 2:
        steps += 1
    tile = _round_up(_cdiv(batch, steps), 128)
    return int(max(128, min(cap, tile)))


# --------------------------------------------------------------------------
# Forward pass
# --------------------------------------------------------------------------
@functools.partial(jax.jit,
                   static_argnames=("dim_u", "batch_tile", "tanh_dtype"))
def controller_forward(t, kparams, *, dim_u, batch_tile=None,
                       tanh_dtype=jnp.float32):
    """t: [B, dim_t] float32; kparams: output of prepare_params().

    Returns [B, dim_u] float32, identical semantics to the PyTorch module
    (the unused `x` argument of the torch forward is simply not taken).
    """
    B, dim_t = t.shape
    w1, b1 = kparams["w1"], kparams["b1"]
    w2, b2 = kparams["w2"], kparams["b2"]
    w3, b3 = kparams["w3"], kparams["b3"]
    w4, b4 = kparams["w4"], kparams["b4"]

    h1_p, in1 = w1.shape
    h2_p = w2.shape[0]
    h3_p = w3.shape[0]
    du_p = w4.shape[0]
    assert in1 == dim_t, "prepared params do not match t's feature dim"
    assert dim_u <= du_p

    if batch_tile is None:
        batch_tile = _choose_batch_tile(B)
    batch_tile = max(128, _round_up(int(batch_tile), 128))
    grid = (pl.cdiv(B, batch_tile),)   # ragged final block handled by Pallas

    def full(shape):
        return pl.BlockSpec(shape, lambda i: (0, 0))   # resident across grid

    in_specs = [
        pl.BlockSpec((batch_tile, dim_t), lambda i: (i, 0)),  # t tile (torch layout)
        full(w1.shape), full(b1.shape),
        full(w2.shape), full(b2.shape),
        full(w3.shape), full(b3.shape),
        full(w4.shape), full(b4.shape),
    ]
    out_spec = pl.BlockSpec((batch_tile, dim_u), lambda i: (i, 0))

    param_bytes = 4 * (w1.size + b1.size + w2.size + b2.size
                       + w3.size + b3.size + w4.size + b4.size)
    cost = pl.CostEstimate(
        flops=2 * B * (dim_t * h1_p + h1_p * h2_p + h2_p * h3_p + h3_p * du_p),
        transcendentals=B * (h1_p + h2_p + h3_p),
        bytes_accessed=4 * B * (dim_t + dim_u) + param_bytes,
    )

    kernel = functools.partial(_mlp_kernel, dim_u=dim_u, tanh_dtype=tanh_dtype)
    return pl.pallas_call(
        kernel,
        out_shape=jax.ShapeDtypeStruct((B, dim_u), jnp.float32),
        grid_spec=pltpu.PrefetchScalarGridSpec(
            num_scalar_prefetch=0,
            grid=grid,
            in_specs=in_specs,
            out_specs=out_spec,
        ),
        compiler_params=pltpu.CompilerParams(
            dimension_semantics=("parallel",)),
        cost_estimate=cost,
    )(t, w1, b1, w2, b2, w3, b3, w4, b4)


# --------------------------------------------------------------------------
# Parameters
# --------------------------------------------------------------------------
def init_controller_params(key, dim_t, dim_u):
    """Match torch init: weight ~ N(0, 0.1), bias = 0.
    Stored in the math-friendly convention: weights (in, out), biases (1, out)."""
    dims = [(dim_t, 50), (50, 10), (10, 10), (10, dim_u)]
    params = {}
    for idx, (din, dout) in enumerate(dims, start=1):
        key, sub = jax.random.split(key)
        params[f"w{idx}"] = (0.1 * jax.random.normal(sub, (din, dout))
                             ).astype(jnp.float32)
        params[f"b{idx}"] = jnp.zeros((1, dout), dtype=jnp.float32)
    return params


def prepare_params(params):
    """One-time conversion of (in,out)/(1,out) params into the padded
    feature-major layout the kernel consumes.  Done once (hoisted out of the
    forward pass) so repeated calls pay zero per-call transpose/pad ops.

    Zero padding is mathematically inert: tanh(0)=0 and padded weight
    rows/cols and bias entries are all zero."""
    kp = {}
    prev_out_p = int(params["w1"].shape[0])     # layer-1 in dim = dim_t (unpadded)
    for idx in (1, 2, 3, 4):
        w = jnp.asarray(params[f"w{idx}"], jnp.float32)          # (in, out)
        b = jnp.reshape(jnp.asarray(params[f"b{idx}"], jnp.float32), (-1,))
        din, dout = w.shape
        out_p = _round_up(dout, 8)
        in_p = prev_out_p
        kp[f"w{idx}"] = jnp.pad(w.T, ((0, out_p - dout), (0, in_p - din)))
        kp[f"b{idx}"] = jnp.pad(b, (0, out_p - dout)).reshape(out_p, 1)
        prev_out_p = out_p
    return kp


def controller_forward_ref(t, params):
    """Pure-JAX reference for correctness checking."""
    h = jnp.tanh(t @ params["w1"] + params["b1"])
    h = jnp.tanh(h @ params["w2"] + params["b2"])
    h = jnp.tanh(h @ params["w3"] + params["b3"])
    return h @ params["w4"] + params["b4"]


# --------------------------------------------------------------------------
if __name__ == "__main__":
    dim_t, dim_u = 4, 2
    batch = 300  # deliberately not a tile multiple: exercises the ragged block

    key = jax.random.PRNGKey(0)
    key, k_t, k_x, k_p = jax.random.split(key, 4)

    t = jax.random.normal(k_t, (batch, dim_t), dtype=jnp.float32)
    x = jax.random.normal(k_x, (batch, 3), dtype=jnp.float32)  # unused, as in torch forward
    params = init_controller_params(k_p, dim_t, dim_u)
    kparams = prepare_params(params)   # one-time prep, hoisted out of forward

    out = controller_forward(t, kparams, dim_u=dim_u)
    out = jax.block_until_ready(out)

    ref = controller_forward_ref(t, params)
    assert out.shape == (batch, dim_u)
    assert jnp.allclose(out, ref, atol=1e-5, rtol=1e-5), "mismatch vs reference"

    # Optional bf16-tanh fast path (EUP lever) — only where the EUP is
    # bf16-capable (v6e / v7x); v5e stays pure f32 as recommended.
    kind = jax.devices()[0].device_kind.lower()
    if ("v6" in kind) or ("v7" in kind):
        out_bf16 = jax.block_until_ready(
            controller_forward(t, kparams, dim_u=dim_u,
                               tanh_dtype=jnp.bfloat16))
        assert jnp.allclose(out_bf16, ref, atol=2e-2, rtol=2e-2), \
            "bf16-tanh path mismatch vs reference"

    print("KERNEL_OK")
</pallas_src>

<mosaic_0001>
module attributes {stable_mosaic.version = 11 : i64} {
  func.func @_mlp_kernel(%arg0: i32, %arg1: memref<256x4xf32, #tpu.memory_space<vmem>>, %arg2: memref<56x4xf32, #tpu.memory_space<vmem>>, %arg3: memref<56x1xf32, #tpu.memory_space<vmem>>, %arg4: memref<16x56xf32, #tpu.memory_space<vmem>>, %arg5: memref<16x1xf32, #tpu.memory_space<vmem>>, %arg6: memref<16x16xf32, #tpu.memory_space<vmem>>, %arg7: memref<16x1xf32, #tpu.memory_space<vmem>>, %arg8: memref<8x16xf32, #tpu.memory_space<vmem>>, %arg9: memref<8x1xf32, #tpu.memory_space<vmem>>, %arg10: memref<256x2xf32, #tpu.memory_space<vmem>>) attributes {dimension_semantics = [#tpu.dimension_semantics<parallel>], iteration_bounds = array<i64: 2>, scalar_prefetch = 0 : i64, scratch_operands = 0 : i64, tpu.core_type = #tpu.core_type<tc>, window_params = [{transform_indices = @transform_0, window_bounds = array<i64: 256, 4>}, {pipeline_mode = #tpu.pipeline_mode<synchronous>, transform_indices = @transform_1, window_bounds = array<i64: 56, 4>}, {pipeline_mode = #tpu.pipeline_mode<synchronous>, transform_indices = @transform_2, window_bounds = array<i64: 56, 1>}, {pipeline_mode = #tpu.pipeline_mode<synchronous>, transform_indices = @transform_3, window_bounds = array<i64: 16, 56>}, {pipeline_mode = #tpu.pipeline_mode<synchronous>, transform_indices = @transform_4, window_bounds = array<i64: 16, 1>}, {pipeline_mode = #tpu.pipeline_mode<synchronous>, transform_indices = @transform_5, window_bounds = array<i64: 16, 16>}, {pipeline_mode = #tpu.pipeline_mode<synchronous>, transform_indices = @transform_6, window_bounds = array<i64: 16, 1>}, {pipeline_mode = #tpu.pipeline_mode<synchronous>, transform_indices = @transform_7, window_bounds = array<i64: 8, 16>}, {pipeline_mode = #tpu.pipeline_mode<synchronous>, transform_indices = @transform_8, window_bounds = array<i64: 8, 1>}, {transform_indices = @transform_9, window_bounds = array<i64: 256, 2>}]} {
    %c0 = arith.constant 0 : index
    %c0_0 = arith.constant 0 : index
    %0 = vector.load %arg1[%c0, %c0_0] : memref<256x4xf32, #tpu.memory_space<vmem>>, vector<256x4xf32>
    %c0_1 = arith.constant 0 : index
    %c0_2 = arith.constant 0 : index
    %1 = vector.load %arg2[%c0_1, %c0_2] : memref<56x4xf32, #tpu.memory_space<vmem>>, vector<56x4xf32>
    %cst = arith.constant dense<0.000000e+00> : vector<56x256xf32>
    %2 = tpu.matmul %1, %0, %cst {dimension_numbers = #tpu.dot_dimension_numbers<[1], [1], [0], [0], [0, 0, 1, 0], [], []>} : vector<56x4xf32>, vector<256x4xf32>, vector<56x256xf32> -> vector<56x256xf32>
    %c0_3 = arith.constant 0 : index
    %c0_4 = arith.constant 0 : index
    %3 = vector.load %arg3[%c0_3, %c0_4] : memref<56x1xf32, #tpu.memory_space<vmem>>, vector<56x1xf32>
    %4 = vector.broadcast %3 : vector<56x1xf32> to vector<56x256xf32>
    %5 = arith.addf %2, %4 : vector<56x256xf32>
    %6 = math.tanh %5 : vector<56x256xf32>
    %c0_5 = arith.constant 0 : index
    %c0_6 = arith.constant 0 : index
    %7 = vector.load %arg4[%c0_5, %c0_6] : memref<16x56xf32, #tpu.memory_space<vmem>>, vector<16x56xf32>
    %cst_7 = arith.constant dense<0.000000e+00> : vector<16x256xf32>
    %8 = tpu.matmul %7, %6, %cst_7 {dimension_numbers = #tpu.dot_dimension_numbers<[1], [0], [0], [1], [0, 0, 1, 1], [], []>} : vector<16x56xf32>, vector<56x256xf32>, vector<16x256xf32> -> vector<16x256xf32>
    %c0_8 = arith.constant 0 : index
    %c0_9 = arith.constant 0 : index
    %9 = vector.load %arg5[%c0_8, %c0_9] : memref<16x1xf32, #tpu.memory_space<vmem>>, vector<16x1xf32>
    %10 = vector.broadcast %9 : vector<16x1xf32> to vector<16x256xf32>
    %11 = arith.addf %8, %10 : vector<16x256xf32>
    %12 = math.tanh %11 : vector<16x256xf32>
    %c0_10 = arith.constant 0 : index
    %c0_11 = arith.constant 0 : index
    %13 = vector.load %arg6[%c0_10, %c0_11] : memref<16x16xf32, #tpu.memory_space<vmem>>, vector<16x16xf32>
    %cst_12 = arith.constant dense<0.000000e+00> : vector<16x256xf32>
    %14 = tpu.matmul %13, %12, %cst_12 {dimension_numbers = #tpu.dot_dimension_numbers<[1], [0], [0], [1], [0, 0, 1, 1], [], []>} : vector<16x16xf32>, vector<16x256xf32>, vector<16x256xf32> -> vector<16x256xf32>
    %c0_13 = arith.constant 0 : index
    %c0_14 = arith.constant 0 : index
    %15 = vector.load %arg7[%c0_13, %c0_14] : memref<16x1xf32, #tpu.memory_space<vmem>>, vector<16x1xf32>
    %16 = vector.broadcast %15 : vector<16x1xf32> to vector<16x256xf32>
    %17 = arith.addf %14, %16 : vector<16x256xf32>
    %18 = math.tanh %17 : vector<16x256xf32>
    %c0_15 = arith.constant 0 : index
    %c0_16 = arith.constant 0 : index
    %19 = vector.load %arg8[%c0_15, %c0_16] : memref<8x16xf32, #tpu.memory_space<vmem>>, vector<8x16xf32>
    %cst_17 = arith.constant dense<0.000000e+00> : vector<8x256xf32>
    %20 = tpu.matmul %19, %18, %cst_17 {dimension_numbers = #tpu.dot_dimension_numbers<[1], [0], [0], [1], [0, 0, 1, 1], [], []>} : vector<8x16xf32>, vector<16x256xf32>, vector<8x256xf32> -> vector<8x256xf32>
    %c0_18 = arith.constant 0 : index
    %c0_19 = arith.constant 0 : index
    %21 = vector.load %arg9[%c0_18, %c0_19] : memref<8x1xf32, #tpu.memory_space<vmem>>, vector<8x1xf32>
    %22 = vector.broadcast %21 : vector<8x1xf32> to vector<8x256xf32>
    %23 = arith.addf %20, %22 : vector<8x256xf32>
    %24 = tpu.transpose %23, [1, 0] : vector<8x256xf32> -> vector<256x8xf32>
    %25 = vector.extract_strided_slice %24 {offsets = [0, 0], sizes = [256, 2], strides = [1, 1]} : vector<256x8xf32> to vector<256x2xf32>
    %c0_20 = arith.constant 0 : index
    %c0_21 = arith.constant 0 : index
    %26 = vector.load %arg10[%c0_20, %c0_21] : memref<256x2xf32, #tpu.memory_space<vmem>>, vector<256x2xf32>
    tpu.vector_store %arg10[%c0_20, %c0_21], %25 {strides = array<i32>} : memref<256x2xf32, #tpu.memory_space<vmem>>, vector<256x2xf32>,
    return
  }
  func.func @transform_0(%arg0: i32) -> (i32, i32) {
    %c0_i32 = arith.constant 0 : i32
    %c0_i32_0 = arith.constant 0 : i32
    return %arg0, %c0_i32 : i32, i32
  }
  func.func @transform_1(%arg0: i32) -> (i32, i32) {
    %c0_i32 = arith.constant 0 : i32
    %c0_i32_0 = arith.constant 0 : i32
    %c0_i32_1 = arith.constant 0 : i32
    return %c0_i32, %c0_i32_0 : i32, i32
  }
  func.func @transform_2(%arg0: i32) -> (i32, i32) {
    %c0_i32 = arith.constant 0 : i32
    %c0_i32_0 = arith.constant 0 : i32
    %c0_i32_1 = arith.constant 0 : i32
    return %c0_i32, %c0_i32_0 : i32, i32
  }
  func.func @transform_3(%arg0: i32) -> (i32, i32) {
    %c0_i32 = arith.constant 0 : i32
    %c0_i32_0 = arith.constant 0 : i32
    %c0_i32_1 = arith.constant 0 : i32
    return %c0_i32, %c0_i32_0 : i32, i32
  }
  func.func @transform_4(%arg0: i32) -> (i32, i32) {
    %c0_i32 = arith.constant 0 : i32
    %c0_i32_0 = arith.constant 0 : i32
    %c0_i32_1 = arith.constant 0 : i32
    return %c0_i32, %c0_i32_0 : i32, i32
  }
  func.func @transform_5(%arg0: i32) -> (i32, i32) {
    %c0_i32 = arith.constant 0 : i32
    %c0_i32_0 = arith.constant 0 : i32
    %c0_i32_1 = arith.constant 0 : i32
    return %c0_i32, %c0_i32_0 : i32, i32
  }
  func.func @transform_6(%arg0: i32) -> (i32, i32) {
    %c0_i32 = arith.constant 0 : i32
    %c0_i32_0 = arith.constant 0 : i32
    %c0_i32_1 = arith.constant 0 : i32
    return %c0_i32, %c0_i32_0 : i32, i32
  }
  func.func @transform_7(%arg0: i32) -> (i32, i32) {
    %c0_i32 = arith.constant 0 : i32
    %c0_i32_0 = arith.constant 0 : i32
    %c0_i32_1 = arith.constant 0 : i32
    return %c0_i32, %c0_i32_0 : i32, i32
  }
  func.func @transform_8(%arg0: i32) -> (i32, i32) {
    %c0_i32 = arith.constant 0 : i32
    %c0_i32_0 = arith.constant 0 : i32
    %c0_i32_1 = arith.constant 0 : i32
    return %c0_i32, %c0_i32_0 : i32, i32
  }
  func.func @transform_9(%arg0: i32) -> (i32, i32) {
    %c0_i32 = arith.constant 0 : i32
    %c0_i32_0 = arith.constant 0 : i32
    return %arg0, %c0_i32 : i32, i32
  }
}

</mosaic_0001>

<llo_original>
// kernel: controller_forward.1
$region0: #{controller_forward.1}
  #allocation0 [shape = 'u32[]', space=smem, size = 0x4, offset = 0x4, fixed_abs, tag = 'smem constant byte address 0x4 - core index']
  #allocation1 [shape = 'u32[144,128]{1,0:T(1,128)}', space=vmem, size = 0x12000, scoped, tag = 'internal scratch']
  %s0 = inlined_call_operand.vmem [shape: f32[300,4], index: 0, kind: input, shape index: {}]
  %s1 = inlined_call_operand.vmem [shape: f32[56,4], index: 1, kind: input, shape index: {}]
  %s2 = inlined_call_operand.vmem [shape: f32[56,1], index: 2, kind: input, shape index: {}]
  %s3 = inlined_call_operand.vmem [shape: f32[16,56], index: 3, kind: input, shape index: {}]
  %s4 = inlined_call_operand.vmem [shape: f32[16,1], index: 4, kind: input, shape index: {}]
  %s5 = inlined_call_operand.vmem [shape: f32[16,16], index: 5, kind: input, shape index: {}]
  %s6 = inlined_call_operand.vmem [shape: f32[16,1], index: 6, kind: input, shape index: {}]
  %s7 = inlined_call_operand.vmem [shape: f32[8,16], index: 7, kind: input, shape index: {}]
  %s8 = inlined_call_operand.vmem [shape: f32[8,1], index: 8, kind: input, shape index: {}]
  %s9 = inlined_call_operand.vmem [shape: f32[300,2], index: 9, kind: output, shape index: {}]
  %s10 = sld [smem:[#allocation0]]
  $region117: #{controller_forward.1} parent=0
    _
  %s12 = ssub.s32 1, %s10
  %s13 = scalar_select 0, %s12, %s10
  $region1: #{controller_forward.1} parent=0
    #allocation2 [shape = 'u8[262144]{0}', space=vmem, size = 0x40000, scoped, tag = 'output window, operand 0']
    loop: start=0, step=1, limit=4
    $region2: #{controller_forward.1} parent=1 // loop_pre_header
      _
    $region3: #{controller_forward.1} parent=1 // loop_header
      %s15 = sphi 0, %s19
      %p16 = scmp.ge.s32.totalorder %s15, 4
      %s25 = sphi 0, %s27
      %s28 = sphi 0, %s25
      %s29 = sphi 0, %s28
      %s45 = sphi 0, %s29
      %s49 = sphi 0, %s49
      %s51 = sphi 0, %s49
      %s52 = sphi 0, %s51
      %s66 = sphi 0, %s52
      %s70 = sphi 0, %s70
      %s72 = sphi 0, %s70
      %s73 = sphi 0, %s72
      %s87 = sphi 0, %s73
      %s91 = sphi 0, %s91
      %s93 = sphi 0, %s91
      %s94 = sphi 0, %s93
      %s108 = sphi 0, %s94
      %s112 = sphi 0, %s112
      %s114 = sphi 0, %s112
      %s115 = sphi 0, %s114
      %s129 = sphi 0, %s115
      %s133 = sphi 0, %s133
      %s135 = sphi 0, %s133
      %s136 = sphi 0, %s135
      %s150 = sphi 0, %s136
      %s154 = sphi 0, %s154
      %s156 = sphi 0, %s154
      %s157 = sphi 0, %s156
      %s171 = sphi 0, %s157
      %s175 = sphi 0, %s175
      %s177 = sphi 0, %s175
      %s178 = sphi 0, %s177
      %s192 = sphi 0, %s178
      %s196 = sphi 0, %s196
      %s198 = sphi 0, %s196
      %s199 = sphi 0, %s198
      %s213 = sphi 0, %s199
      %s219 = sphi 0, %s221
      %s222 = sphi 0, %s219
      %s223 = sphi 0, %s222
      %s239 = sphi 0, %s223
    $region4: #{controller_forward.1} parent=1 // loop_header_branch
      %18 = sbr.rel (%p16) target = $region8
    $region5: #{controller_forward.1} parent=1 // loop_body
      %s20 = ssub.s32 %s15, 1
      %s21 = ssub.s32 %s15, 2
      %s22 = sadd.s32 %s15, 1
      %s23 = ssub.s32 %s15, %s22
      %p24 = scmp.eq.s32.totalorder %s23, 0
      %s26 = sadd.s32 %s25, 1
      %s27 = scalar_select %p24, %s25, %s26
      %p30 = pneg %p24
      %p31 = scmp.eq.s32.totalorder %s15, 1
      %p32 = por %p30, %p31
      %p33 = scmp.ne.s32.totalorder %s25, %s28
      %p34 = scmp.eq.s32.totalorder %s15, 0
      %p35 = por %p33, %p34
      %p36 = scmp.ne.s32.totalorder %s25, %s28
      %p37 = scmp.eq.s32.totalorder %s20, 1
      %p38 = por %p36, %p37
      %p39 = scmp.ne.s32.totalorder %s28, %s29
      %p40 = scmp.eq.s32.totalorder %s20, 0
      %p41 = por %p39, %p40
      %p42 = scmp.ne.s32.totalorder %s28, %s29
      %p43 = scmp.eq.s32.totalorder %s21, 1
      %p44 = por %p42, %p43
      %p46 = scmp.ne.s32.totalorder %s29, %s45
      %p47 = scmp.eq.s32.totalorder %s21, 0
      %p48 = por %p46, %p47
      %s50 = sadd.s32 %s49, 1
      %p53 = scmp.eq.s32.totalorder %s15, 1
      %p54 = scmp.ne.s32.totalorder %s49, %s51
      %p55 = scmp.eq.s32.totalorder %s15, 0
      %p56 = por %p54, %p55
      %p57 = scmp.ne.s32.totalorder %s49, %s51
      %p58 = scmp.eq.s32.totalorder %s20, 1
      %p59 = por %p57, %p58
      %p60 = scmp.ne.s32.totalorder %s51, %s52
      %p61 = scmp.eq.s32.totalorder %s20, 0
      %p62 = por %p60, %p61
      %p63 = scmp.ne.s32.totalorder %s51, %s52
      %p64 = scmp.eq.s32.totalorder %s21, 1
      %p65 = por %p63, %p64
      %p67 = scmp.ne.s32.totalorder %s52, %s66
      %p68 = scmp.eq.s32.totalorder %s21, 0
      %p69 = por %p67, %p68
      %s71 = sadd.s32 %s70, 1
      %p74 = scmp.eq.s32.totalorder %s15, 1
      %p75 = scmp.ne.s32.totalorder %s70, %s72
      %p76 = scmp.eq.s32.totalorder %s15, 0
      %p77 = por %p75, %p76
      %p78 = scmp.ne.s32.totalorder %s70, %s72
      %p79 = scmp.eq.s32.totalorder %s20, 1
      %p80 = por %p78, %p79
      %p81 = scmp.ne.s32.totalorder %s72, %s73
      %p82 = scmp.eq.s32.totalorder %s20, 0
      %p83 = por %p81, %p82
      %p84 = scmp.ne.s32.totalorder %s72, %s73
      %p85 = scmp.eq.s32.totalorder %s21, 1
      %p86 = por %p84, %p85
      %p88 = scmp.ne.s32.totalorder %s73, %s87
      %p89 = scmp.eq.s32.totalorder %s21, 0
      %p90 = por %p88, %p89
      %s92 = sadd.s32 %s91, 1
      %p95 = scmp.eq.s32.totalorder %s15, 1
      %p96 = scmp.ne.s32.totalorder %s91, %s93
      %p97 = scmp.eq.s32.totalorder %s15, 0
      %p98 = por %p96, %p97
      %p99 = scmp.ne.s32.totalorder %s91, %s93
      %p100 = scmp.eq.s32.totalorder %s20, 1
      %p101 = por %p99, %p100
      %p102 = scmp.ne.s32.totalorder %s93, %s94
      %p103 = scmp.eq.s32.totalorder %s20, 0
      %p104 = por %p102, %p103
      %p105 = scmp.ne.s32.totalorder %s93, %s94
      %p106 = scmp.eq.s32.totalorder %s21, 1
      %p107 = por %p105, %p106
      %p109 = scmp.ne.s32.totalorder %s94, %s108
      %p110 = scmp.eq.s32.totalorder %s21, 0
      %p111 = por %p109, %p110
      %s113 = sadd.s32 %s112, 1
      %p116 = scmp.eq.s32.totalorder %s15, 1
      %p117 = scmp.ne.s32.totalorder %s112, %s114
      %p118 = scmp.eq.s32.totalorder %s15, 0
      %p119 = por %p117, %p118
      %p120 = scmp.ne.s32.totalorder %s112, %s114
      %p121 = scmp.eq.s32.totalorder %s20, 1
      %p122 = por %p120, %p121
      %p123 = scmp.ne.s32.totalorder %s114, %s115
      %p124 = scmp.eq.s32.totalorder %s20, 0
      %p125 = por %p123, %p124
      %p126 = scmp.ne.s32.totalorder %s114, %s115
      %p127 = scmp.eq.s32.totalorder %s21, 1
      %p128 = por %p126, %p127
      %p130 = scmp.ne.s32.totalorder %s115, %s129
      %p131 = scmp.eq.s32.totalorder %s21, 0
      %p132 = por %p130, %p131
      %s134 = sadd.s32 %s133, 1
      %p137 = scmp.eq.s32.totalorder %s15, 1
      %p138 = scmp.ne.s32.totalorder %s133, %s135
      %p139 = scmp.eq.s32.totalorder %s15, 0
      %p140 = por %p138, %p139
      %p141 = scmp.ne.s32.totalorder %s133, %s135
      %p142 = scmp.eq.s32.totalorder %s20, 1
      %p143 = por %p141, %p142
      %p144 = scmp.ne.s32.totalorder %s135, %s136
      %p145 = scmp.eq.s32.totalorder %s20, 0
      %p146 = por %p144, %p145
      %p147 = scmp.ne.s32.totalorder %s135, %s136
      %p148 = scmp.eq.s32.totalorder %s21, 1
      %p149 = por %p147, %p148
      %p151 = scmp.ne.s32.totalorder %s136, %s150
      %p152 = scmp.eq.s32.totalorder %s21, 0
      %p153 = por %p151, %p152
      %s155 = sadd.s32 %s154, 1
      %p158 = scmp.eq.s32.totalorder %s15, 1
      %p159 = scmp.ne.s32.totalorder %s154, %s156
      %p160 = scmp.eq.s32.totalorder %s15, 0
      %p161 = por %p159, %p160
      %p162 = scmp.ne.s32.totalorder %s154, %s156
      %p163 = scmp.eq.s32.totalorder %s20, 1
      %p164 = por %p162, %p163
      %p165 = scmp.ne.s32.totalorder %s156, %s157
      %p166 = scmp.eq.s32.totalorder %s20, 0
      %p167 = por %p165, %p166
      %p168 = scmp.ne.s32.totalorder %s156, %s157
      %p169 = scmp.eq.s32.totalorder %s21, 1
      %p170 = por %p168, %p169
      %p172 = scmp.ne.s32.totalorder %s157, %s171
      %p173 = scmp.eq.s32.totalorder %s21, 0
      %p174 = por %p172, %p173
      %s176 = sadd.s32 %s175, 1
      %p179 = scmp.eq.s32.totalorder %s15, 1
      %p180 = scmp.ne.s32.totalorder %s175, %s177
      %p181 = scmp.eq.s32.totalorder %s15, 0
      %p182 = por %p180, %p181
      %p183 = scmp.ne.s32.totalorder %s175, %s177
      %p184 = scmp.eq.s32.totalorder %s20, 1
      %p185 = por %p183, %p184
      %p186 = scmp.ne.s32.totalorder %s177, %s178
      %p187 = scmp.eq.s32.totalorder %s20, 0
      %p188 = por %p186, %p187
      %p189 = scmp.ne.s32.totalorder %s177, %s178
      %p190 = scmp.eq.s32.totalorder %s21, 1
      %p191 = por %p189, %p190
      %p193 = scmp.ne.s32.totalorder %s178, %s192
      %p194 = scmp.eq.s32.totalorder %s21, 0
      %p195 = por %p193, %p194
      %s197 = sadd.s32 %s196, 1
      %p200 = scmp.eq.s32.totalorder %s15, 1
      %p201 = scmp.ne.s32.totalorder %s196, %s198
      %p202 = scmp.eq.s32.totalorder %s15, 0
      %p203 = por %p201, %p202
      %p204 = scmp.ne.s32.totalorder %s196, %s198
      %p205 = scmp.eq.s32.totalorder %s20, 1
      %p206 = por %p204, %p205
      %p207 = scmp.ne.s32.totalorder %s198, %s199
      %p208 = scmp.eq.s32.totalorder %s20, 0
      %p209 = por %p207, %p208
      %p210 = scmp.ne.s32.totalorder %s198, %s199
      %p211 = scmp.eq.s32.totalorder %s21, 1
      %p212 = por %p210, %p211
      %p214 = scmp.ne.s32.totalorder %s199, %s213
      %p215 = scmp.eq.s32.totalorder %s21, 0
      %p216 = por %p214, %p215
      %s217 = ssub.s32 %s15, %s22
      %p218 = scmp.eq.s32.totalorder %s217, 0
      %s220 = sadd.s32 %s219, 1
      %s221 = scalar_select %p218, %s219, %s220
      %p224 = pneg %p218
      %p225 = scmp.eq.s32.totalorder %s15, 1
      %p226 = por %p224, %p225
      %p227 = scmp.ne.s32.totalorder %s219, %s222
      %p228 = scmp.eq.s32.totalorder %s15, 0
      %p229 = por %p227, %p228
      %p230 = scmp.ne.s32.totalorder %s219, %s222
      %p231 = scmp.eq.s32.totalorder %s20, 1
      %p232 = por %p230, %p231
      %p233 = scmp.ne.s32.totalorder %s222, %s223
      %p234 = scmp.eq.s32.totalorder %s20, 0
      %p235 = por %p233, %p234
      %p236 = scmp.ne.s32.totalorder %s222, %s223
      %p237 = scmp.eq.s32.totalorder %s21, 1
      %p238 = por %p236, %p237
      %p240 = scmp.ne.s32.totalorder %s223, %s239
      %p241 = scmp.eq.s32.totalorder %s21, 0
      %p242 = por %p240, %p241
      %p243 = scmp.le.s32.totalorder 1, %s15
      %p244 = scmp.lt.s32.totalorder %s15, 3
      %p245 = pnand %p243, %p244
      %p246 = pneg %p245
      // Predicated region
      $region9: #{controller_forward.1} parent=5 // pred_check
        _
      $region10: #{controller_forward.1} parent=5 // pred_check_branch
        %248 = sbr.rel (%p245) target = $region12
      $region11: #{controller_forward.1} parent=5 // pred_region
        %s249 = ssub.s32 %s15, 1
        // Predicated region
        $region13: #{controller_forward.1} parent=11 // pred_check
          %p250 = pneg %p62
        $region14: #{controller_forward.1} parent=11 // pred_check_branch
          %252 = sbr.rel (%p250) target = $region16
        $region15: #{controller_forward.1} parent=11 // pred_region
          _
        $region16: #{controller_forward.1} parent=11 // pred_fallthru
          _
        // Predicated region
        $region17: #{controller_forward.1} parent=11 // pred_check
          %p253 = pneg %p83
        $region18: #{controller_forward.1} parent=11 // pred_check_branch
          %255 = sbr.rel (%p253) target = $region20
        $region19: #{controller_forward.1} parent=11 // pred_region
          _
        $region20: #{controller_forward.1} parent=11 // pred_fallthru
          _
        // Predicated region
        $region21: #{controller_forward.1} parent=11 // pred_check
          %p256 = pneg %p104
        $region22: #{controller_forward.1} parent=11 // pred_check_branch
          %258 = sbr.rel (%p256) target = $region24
        $region23: #{controller_forward.1} parent=11 // pred_region
          _
        $region24: #{controller_forward.1} parent=11 // pred_fallthru
          _
        // Predicated region
        $region25: #{controller_forward.1} parent=11 // pred_check
          %p259 = pneg %p125
        $region26: #{controller_forward.1} parent=11 // pred_check_branch
          %261 = sbr.rel (%p259) target = $region28
        $region27: #{controller_forward.1} parent=11 // pred_region
          _
        $region28: #{controller_forward.1} parent=11 // pred_fallthru
          _
        // Predicated region
        $region29: #{controller_forward.1} parent=11 // pred_check
          %p262 = pneg %p146
        $region30: #{controller_forward.1} parent=11 // pred_check_branch
          %264 = sbr.rel (%p262) target = $region32
        $region31: #{controller_forward.1} parent=11 // pred_region
          _
        $region32: #{controller_forward.1} parent=11 // pred_fallthru
          _
        // Predicated region
        $region33: #{controller_forward.1} parent=11 // pred_check
          %p265 = pneg %p167
        $region34: #{controller_forward.1} parent=11 // pred_check_branch
          %267 = sbr.rel (%p265) target = $region36
        $region35: #{controller_forward.1} parent=11 // pred_region
          _
        $region36: #{controller_forward.1} parent=11 // pred_fallthru
          _
        // Predicated region
        $region37: #{controller_forward.1} parent=11 // pred_check
          %p268 = pneg %p188
        $region38: #{controller_forward.1} parent=11 // pred_check_branch
          %270 = sbr.rel (%p268) target = $region40
        $region39: #{controller_forward.1} parent=11 // pred_region
          _
        $region40: #{controller_forward.1} parent=11 // pred_fallthru
          _
        // Predicated region
        $region41: #{controller_forward.1} parent=11 // pred_check
          %p271 = pneg %p209
        $region42: #{controller_forward.1} parent=11 // pred_check_branch
          %273 = sbr.rel (%p271) target = $region44
        $region43: #{controller_forward.1} parent=11 // pred_region
          _
        $region44: #{controller_forward.1} parent=11 // pred_fallthru
          _
      $region12: #{controller_forward.1} parent=5 // pred_fallthru
        _
      %p274 = scmp.lt.s32.totalorder %s15, 2
      // Predicated region
      $region45: #{controller_forward.1} parent=5 // pred_check
        %p275 = pneg %p274
      $region46: #{controller_forward.1} parent=5 // pred_check_branch
        %277 = sbr.rel (%p275) target = $region48
      $region47: #{controller_forward.1} parent=5 // pred_region
        // Predicated region
        $region49: #{controller_forward.1} parent=47 // pred_check
          %p278 = pneg %p35
        $region50: #{controller_forward.1} parent=47 // pred_check_branch
          %280 = sbr.rel (%p278) target = $region52
        $region51: #{controller_forward.1} parent=47 // pred_region
          %s281 = smul.u32 32, %s15
          %s282 = ssub.s32 38, %s281
          %p283 = scmp.lt.s32.totalorder %s282, 32
          %s284 = scalar_select %p283, %s282, 32
          %s285 = smul.u32 128, %s284
          %p286 = scmp.lt.s32.totalorder %s281, 37
          %s287 = scalar_select %p286, %s281, 37
          %s288 = smul.addr %s287, 8
          %s289 = scalar_lea.vmem %s0, %s288
          %s290 = smul.u32 32, %s15
          %s291 = ssub.s32 38, %s290
          %p292 = scmp.lt.s32.totalorder %s291, 32
          %s293 = scalar_select %p292, %s291, 32
          %s294 = smul.u32 128, %s293
        $region52: #{controller_forward.1} parent=47 // pred_fallthru
          _
      $region48: #{controller_forward.1} parent=5 // pred_fallthru
        _
      %p295 = scmp.le.s32.totalorder 1, %s15
      %p296 = scmp.lt.s32.totalorder %s15, 3
      %p297 = pnand %p295, %p296
      %p298 = pneg %p297
      // Predicated region
      $region53: #{controller_forward.1} parent=5 // pred_check
        _
      $region54: #{controller_forward.1} parent=5 // pred_check_branch
        %300 = sbr.rel (%p297) target = $region56
      $region55: #{controller_forward.1} parent=5 // pred_region
        %s301 = ssub.s32 %s15, 1
        %s302 = smul.u32 32, %s20
        %s303 = ssub.s32 38, %s302
        %p304 = scmp.lt.s32.totalorder %s303, 32
        %s305 = scalar_select %p304, %s303, 32
        %s306 = smul.u32 128, %s305
        %p307 = scmp.lt.s32.totalorder %s302, 37
        %s308 = scalar_select %p307, %s302, 37
        %s309 = smul.addr %s308, 8
        %s310 = scalar_lea.vmem %s0, %s309
        %p311 = pneg %p41
        %p312 = pneg %p38
        %p313 = pneg %p62
        %p314 = pneg %p59
        %p315 = pneg %p83
        %p316 = pneg %p80
        %p317 = pneg %p104
        %p318 = pneg %p101
        %p319 = pneg %p125
        %p320 = pneg %p122
        %p321 = pneg %p146
        %p322 = pneg %p143
        %p323 = pneg %p167
        %p324 = pneg %p164
        %p325 = pneg %p188
        %p326 = pneg %p185
        %p327 = pneg %p209
        %p328 = pneg %p206
        %p329 = pneg %p235
        %p330 = pneg %p232
        %s331 = sand.u32 %s222, 1
        %s332 = sand.u32 %s222, 1
        %s333 = smul.addr %s332, 256
        %s334 = scalar_lea.vmem [#allocation2], %s333
        %s335 = smul.u32 32, %s20
        %s336 = ssub.s32 38, %s335
        %p337 = scmp.lt.s32.totalorder %s336, 32
        %s338 = scalar_select %p337, %s336, 32
        %s339 = smul.u32 128, %s338
        %p340 = scmp.lt.s32.totalorder %s335, 37
        %s341 = scalar_select %p340, %s335, 37
        %s342 = smul.addr %s341, 8
        %s343 = scalar_lea.vmem %s0, %s342
        %s344 = smul.u32 32, %s20
        %s345 = ssub.s32 38, %s344
        %p346 = scmp.lt.s32.totalorder %s345, 32
        %s347 = scalar_select %p346, %s345, 32
        %s348 = smul.u32 128, %s347
        %s349 = smul.u32 32, %s20
        %s350 = ssub.s32 38, %s349
        %p351 = scmp.lt.s32.totalorder %s350, 32
        %s352 = scalar_select %p351, %s350, 32
        %s353 = smul.u32 128, %s352
        %v354 = vld [vmem:[%s343] sm:$0xff]
        %v355 = vld [vmem:[%s343 + $0x8] sm:$0xff]
        %v356 = vld [vmem:[%s343 + $0x10] sm:$0xff]
        %v357 = vld [vmem:[%s343 + $0x18] sm:$0xff]
        %v358 = vld [vmem:[%s343 + $0x20] sm:$0xff]
        %v359 = vld [vmem:[%s343 + $0x28] sm:$0xff]
        %v360 = vld [vmem:[%s343 + $0x30] sm:$0xff]
        %v361 = vld [vmem:[%s343 + $0x38] sm:$0xff]
        %v362 = vld [vmem:[%s343 + $0x40] sm:$0xff]
        %v363 = vld [vmem:[%s343 + $0x48] sm:$0xff]
        %v364 = vld [vmem:[%s343 + $0x50] sm:$0xff]
        %v365 = vld [vmem:[%s343 + $0x58] sm:$0xff]
        %v366 = vld [vmem:[%s343 + $0x60] sm:$0xff]
        %v367 = vld [vmem:[%s343 + $0x68] sm:$0xff]
        %v368 = vld [vmem:[%s343 + $0x70] sm:$0xff]
        %v369 = vld [vmem:[%s343 + $0x78] sm:$0xff]
        %v370 = vld [vmem:[%s343 + $0x80] sm:$0xff]
        %v371 = vld [vmem:[%s343 + $0x88] sm:$0xff]
        %v372 = vld [vmem:[%s343 + $0x90] sm:$0xff]
        %v373 = vld [vmem:[%s343 + $0x98] sm:$0xff]
        %v374 = vld [vmem:[%s343 + $0xa0] sm:$0xff]
        %v375 = vld [vmem:[%s343 + $0xa8] sm:$0xff]
        %v376 = vld [vmem:[%s343 + $0xb0] sm:$0xff]
        %v377 = vld [vmem:[%s343 + $0xb8] sm:$0xff]
        %v378 = vld [vmem:[%s343 + $0xc0] sm:$0xff]
        %v379 = vld [vmem:[%s343 + $0xc8] sm:$0xff]
        %v380 = vld [vmem:[%s343 + $0xd0] sm:$0xff]
        %v381 = vld [vmem:[%s343 + $0xd8] sm:$0xff]
        %v382 = vld [vmem:[%s343 + $0xe0] sm:$0xff]
        %v383 = vld [vmem:[%s343 + $0xe8] sm:$0xff]
        %v384 = vld [vmem:[%s343 + $0xf0] sm:$0xff]
        %v385 = vld [vmem:[%s343 + $0xf8] sm:$0xff]
        %v386 = vld [vmem:[%s1] sm:$0xff]
        %v387 = vld [vmem:[%s1 + $0x8] sm:$0xff]
        %v388 = vld [vmem:[%s1 + $0x10] sm:$0xff]
        %v389 = vld [vmem:[%s1 + $0x18] sm:$0xff]
        %v390 = vld [vmem:[%s1 + $0x20] sm:$0xff]
        %v391 = vld [vmem:[%s1 + $0x28] sm:$0xff]
        %v392 = vld [vmem:[%s1 + $0x30] sm:$0xff]
        %v393 = vld [vmem:[%s2] sm:$0xff]
        %v394 = vld [vmem:[%s2 + $0x8] sm:$0xff]
        %v395 = vld [vmem:[%s2 + $0x10] sm:$0xff]
        %v396 = vld [vmem:[%s2 + $0x18] sm:$0xff]
        %v397 = vld [vmem:[%s2 + $0x20] sm:$0xff]
        %v398 = vld [vmem:[%s2 + $0x28] sm:$0xff]
        %v399 = vld [vmem:[%s2 + $0x30] sm:$0xff]
        %401 = vset.pattern.permute.xlu0 0
        %402 = vperm.xlu0 %401, %v393
        %v403 = vpop.permute.xlu0 %402
        %406 = vset.pattern.permute.xlu0 0
        %407 = vperm.xlu0 %406, %v394
        %v408 = vpop.permute.xlu0 %407
        %411 = vset.pattern.permute.xlu0 0
        %412 = vperm.xlu0 %411, %v395
        %v413 = vpop.permute.xlu0 %412
        %416 = vset.pattern.permute.xlu0 0
        %417 = vperm.xlu0 %416, %v396
        %v418 = vpop.permute.xlu0 %417
        %421 = vset.pattern.permute.xlu0 0
        %422 = vperm.xlu0 %421, %v397
        %v423 = vpop.permute.xlu0 %422
        %426 = vset.pattern.permute.xlu0 0
        %427 = vperm.xlu0 %426, %v398
        %v428 = vpop.permute.xlu0 %427
        %431 = vset.pattern.permute.xlu0 0
        %432 = vperm.xlu0 %431, %v399
        %v433 = vpop.permute.xlu0 %432
        %vm435 = vcmask 31744
        %v437 = vsel %vm435, %v386, 0
        %v440 = vsel %vm435, %v387, 0
        %v443 = vsel %vm435, %v388, 0
        %v446 = vsel %vm435, %v389, 0
        %v449 = vsel %vm435, %v390, 0
        %v452 = vsel %vm435, %v391, 0
        %v455 = vsel %vm435, %v392, 0
        %v458 = vsel %vm435, %v354, 0
        %v461 = vsel %vm435, %v355, 0
        %v464 = vsel %vm435, %v356, 0
        %v467 = vsel %vm435, %v357, 0
        %v470 = vsel %vm435, %v358, 0
        %v473 = vsel %vm435, %v359, 0
        %v476 = vsel %vm435, %v360, 0
        %v479 = vsel %vm435, %v361, 0
        %v482 = vsel %vm435, %v362, 0
        %v485 = vsel %vm435, %v363, 0
        %v488 = vsel %vm435, %v364, 0
        %v491 = vsel %vm435, %v365, 0
        %v494 = vsel %vm435, %v366, 0
        %v497 = vsel %vm435, %v367, 0
        %v500 = vsel %vm435, %v368, 0
        %v503 = vsel %vm435, %v369, 0
        %v506 = vsel %vm435, %v370, 0
        %v509 = vsel %vm435, %v371, 0
        %v512 = vsel %vm435, %v372, 0
        %v515 = vsel %vm435, %v373, 0
        %v518 = vsel %vm435, %v374, 0
        %v521 = vsel %vm435, %v375, 0
        %v524 = vsel %vm435, %v376, 0
        %v527 = vsel %vm435, %v377, 0
        %v530 = vsel %vm435, %v378, 0
        %v533 = vsel %vm435, %v379, 0
        %v536 = vsel %vm435, %v380, 0
        %v539 = vsel %vm435, %v381, 0
        %v542 = vsel %vm435, %v382, 0
        %v545 = vsel %vm435, %v383, 0
        %v548 = vsel %vm435, %v384, 0
        %v551 = vsel %vm435, %v385, 0
        %553 = vmatprep.subr.mxu0 0.0
        %554 = vmatpush1.xpose.msra.mxu0 %v503
        %555 = vmatprep.subr.mxu0 0.0
        %556 = vmatpush1.xpose.msra.mxu0 %v500
        %557 = vmatprep.subr.mxu0 0.0
        %558 = vmatpush1.xpose.msra.mxu0 %v497
        %559 = vmatprep.subr.mxu0 0.0
        %560 = vmatpush1.xpose.msra.mxu0 %v494
        %561 = vmatprep.subr.mxu0 0.0
        %562 = vmatpush1.xpose.msra.mxu0 %v491
        %563 = vmatprep.subr.mxu0 0.0
        %564 = vmatpush1.xpose.msra.mxu0 %v488
        %565 = vmatprep.subr.mxu0 0.0
        %566 = vmatpush1.xpose.msra.mxu0 %v485
        %567 = vmatprep.subr.mxu0 0.0
        %568 = vmatpush1.xpose.msra.mxu0 %v482
        %569 = vmatprep.subr.mxu0 0.0
        %570 = vmatpush1.xpose.msra.mxu0 %v479
        %571 = vmatprep.subr.mxu0 0.0
        %572 = vmatpush1.xpose.msra.mxu0 %v476
        %573 = vmatprep.subr.mxu0 0.0
        %574 = vmatpush1.xpose.msra.mxu0 %v473
        %575 = vmatprep.subr.mxu0 0.0
        %576 = vmatpush1.xpose.msra.mxu0 %v470
        %577 = vmatprep.subr.mxu0 0.0
        %578 = vmatpush1.xpose.msra.mxu0 %v467
        %579 = vmatprep.subr.mxu0 0.0
        %580 = vmatpush1.xpose.msra.mxu0 %v464
        %581 = vmatprep.subr.mxu0 0.0
        %582 = vmatpush1.xpose.msra.mxu0 %v461
        %583 = vmatprep.subr.mxu0 0.0
        %584 = vmatpush1.xpose.msra.mxu0 %v458
        %585 = vmatprep.subr.mxu0 0.0
        %586 = vmatpush2.xpose.msra.mxu0 %v551
        %587 = vmatprep.subr.mxu0 0.0
        %588 = vmatpush2.xpose.msra.mxu0 %v548
        %589 = vmatprep.subr.mxu0 0.0
        %590 = vmatpush2.xpose.msra.mxu0 %v545
        %591 = vmatprep.subr.mxu0 0.0
        %592 = vmatpush2.xpose.msra.mxu0 %v542
        %593 = vmatprep.subr.mxu0 0.0
        %594 = vmatpush2.xpose.msra.mxu0 %v539
        %595 = vmatprep.subr.mxu0 0.0
        %596 = vmatpush2.xpose.msra.mxu0 %v536
        %597 = vmatprep.subr.mxu0 0.0
        %598 = vmatpush2.xpose.msra.mxu0 %v533
        %599 = vmatprep.subr.mxu0 0.0
        %600 = vmatpush2.xpose.msra.mxu0 %v530
        %601 = vmatprep.subr.mxu0 0.0
        %602 = vmatpush2.xpose.msra.mxu0 %v527
        %603 = vmatprep.subr.mxu0 0.0
        %604 = vmatpush2.xpose.msra.mxu0 %v524
        %605 = vmatprep.subr.mxu0 0.0
        %606 = vmatpush2.xpose.msra.mxu0 %v521
        %607 = vmatprep.subr.mxu0 0.0
        %608 = vmatpush2.xpose.msra.mxu0 %v518
        %609 = vmatprep.subr.mxu0 0.0
        %610 = vmatpush2.xpose.msra.mxu0 %v515
        %611 = vmatprep.subr.mxu0 0.0
        %612 = vmatpush2.xpose.msra.mxu0 %v512
        %613 = vmatprep.subr.mxu0 0.0
        %614 = vmatpush2.xpose.msra.mxu0 %v509
        %615 = vmatprep.subr.mxu0 0.0
        %616 = vmatpush2.xpose.msra.mxu0 %v506
        %617 = vmatprep.mubr.f32.mxu0 0.0
        %618 = vmatmul.mubr.f32.gmra.mxu0 %v437
        %v619 = vpop.f32.mrf.mxu0
        %v620 = vadd.f32 %v403, %v619
        %v621 = vpop.f32.mrf.mxu0
        %v622 = vadd.f32 %v403, %v621
        %623 = vmatprep.mubr.f32.mxu0 0.0
        %624 = vmatmul.mubr.f32.gmra.mxu0 %v440
        %v625 = vpop.f32.mrf.mxu0
        %v626 = vadd.f32 %v408, %v625
        %v627 = vpop.f32.mrf.mxu0
        %v628 = vadd.f32 %v408, %v627
        %629 = vmatprep.mubr.f32.mxu0 0.0
        %630 = vmatmul.mubr.f32.gmra.mxu0 %v443
        %v631 = vpop.f32.mrf.mxu0
        %v632 = vadd.f32 %v413, %v631
        %v633 = vpop.f32.mrf.mxu0
        %v634 = vadd.f32 %v413, %v633
        %635 = vmatprep.mubr.f32.mxu0 0.0
        %636 = vmatmul.mubr.f32.gmra.mxu0 %v446
        %v637 = vpop.f32.mrf.mxu0
        %v638 = vadd.f32 %v418, %v637
        %v639 = vpop.f32.mrf.mxu0
        %v640 = vadd.f32 %v418, %v639
        %641 = vmatprep.mubr.f32.mxu0 0.0
        %642 = vmatmul.mubr.f32.gmra.mxu0 %v449
        %v643 = vpop.f32.mrf.mxu0
        %v644 = vadd.f32 %v423, %v643
        %v645 = vpop.f32.mrf.mxu0
        %v646 = vadd.f32 %v423, %v645
        %647 = vmatprep.mubr.f32.mxu0 0.0
        %648 = vmatmul.mubr.f32.gmra.mxu0 %v452
        %v649 = vpop.f32.mrf.mxu0
        %v650 = vadd.f32 %v428, %v649
        %v651 = vpop.f32.mrf.mxu0
        %v652 = vadd.f32 %v428, %v651
        %653 = vmatprep.mubr.f32.mxu0 0.0
        %654 = vmatmul.mubr.f32.gmra.mxu0 %v455
        %v655 = vpop.f32.mrf.mxu0
        %v656 = vadd.f32 %v433, %v655
        %v657 = vpop.f32.mrf.mxu0
        %v658 = vadd.f32 %v433, %v657
        %659 = vdwg.mxu0
        %v660 = vtanh.pop %v620
        %v661 = vtanh.pop %v622
        %v662 = vtanh.pop %v626
        %v663 = vtanh.pop %v628
        %v664 = vtanh.pop %v632
        %v665 = vtanh.pop %v634
        %v666 = vtanh.pop %v638
        %v667 = vtanh.pop %v640
        %v668 = vtanh.pop %v644
        %v669 = vtanh.pop %v646
        %v670 = vtanh.pop %v650
        %v671 = vtanh.pop %v652
        %v672 = vtanh.pop %v656
        %v673 = vtanh.pop %v658
        %v674 = vld [vmem:[%s3] sm:$0xff]
        %v675 = vld [vmem:[%s3 + $0x8] sm:$0xff]
        %v676 = vld [vmem:[%s4] sm:$0xff]
        %v677 = vld [vmem:[%s4 + $0x8] sm:$0xff]
        %679 = vset.pattern.permute.xlu0 0
        %680 = vperm.xlu0 %679, %v676
        %v681 = vpop.permute.xlu0 %680
        %684 = vset.pattern.permute.xlu0 0
        %685 = vperm.xlu0 %684, %v677
        %v686 = vpop.permute.xlu0 %685
        %vm688 = vcmask 457728
        %v690 = vsel %vm688, %v674, 0
        %v693 = vsel %vm688, %v675, 0
        %695 = vmatprep.subr.mxu0 0.0
        %696 = vmatpush1.msra.mxu0 0.0
        %697 = vmatprep.subr.mxu0 0.0
        %698 = vmatpush1.msra.mxu0 0.0
        %699 = vmatprep.subr.mxu0 0.0
        %700 = vmatpush1.msra.mxu0 0.0
        %701 = vmatprep.subr.mxu0 0.0
        %702 = vmatpush1.msra.mxu0 0.0
        %703 = vmatprep.subr.mxu0 0.0
        %704 = vmatpush1.msra.mxu0 0.0
        %705 = vmatprep.subr.mxu0 0.0
        %706 = vmatpush1.msra.mxu0 0.0
        %707 = vmatprep.subr.mxu0 0.0
        %708 = vmatpush1.msra.mxu0 0.0
        %709 = vmatprep.subr.mxu0 0.0
        %710 = vmatpush1.msra.mxu0 0.0
        %711 = vmatprep.subr.mxu0 0.0
        %712 = vmatpush1.msra.mxu0 0.0
        %713 = vmatprep.subr.mxu0 %v673
        %714 = vmatpush1.msra.mxu0 %v672
        %715 = vmatprep.subr.mxu0 %v671
        %716 = vmatpush1.msra.mxu0 %v670
        %717 = vmatprep.subr.mxu0 %v669
        %718 = vmatpush1.msra.mxu0 %v668
        %719 = vmatprep.subr.mxu0 %v667
        %720 = vmatpush1.msra.mxu0 %v666
        %721 = vmatprep.subr.mxu0 %v665
        %722 = vmatpush1.msra.mxu0 %v664
        %723 = vmatprep.subr.mxu0 %v663
        %724 = vmatpush1.msra.mxu0 %v662
        %725 = vmatprep.subr.mxu0 %v661
        %726 = vmatpush1.msra.mxu0 %v660
        %727 = vmatprep.subr.mxu0 0.0
        %728 = vmatpush2.msra.mxu0 0.0
        %729 = vmatprep.subr.mxu0 0.0
        %730 = vmatpush2.msra.mxu0 0.0
        %731 = vmatprep.subr.mxu0 0.0
        %732 = vmatpush2.msra.mxu0 0.0
        %733 = vmatprep.subr.mxu0 0.0
        %734 = vmatpush2.msra.mxu0 0.0
        %735 = vmatprep.subr.mxu0 0.0
        %736 = vmatpush2.msra.mxu0 0.0
        %737 = vmatprep.subr.mxu0 0.0
        %738 = vmatpush2.msra.mxu0 0.0
        %739 = vmatprep.subr.mxu0 0.0
        %740 = vmatpush2.msra.mxu0 0.0
        %741 = vmatprep.subr.mxu0 0.0
        %742 = vmatpush2.msra.mxu0 0.0
        %743 = vmatprep.subr.mxu0 0.0
        %744 = vmatpush2.msra.mxu0 0.0
        %745 = vmatprep.subr.mxu0 0.0
        %746 = vmatpush2.msra.mxu0 0.0
        %747 = vmatprep.subr.mxu0 0.0
        %748 = vmatpush2.msra.mxu0 0.0
        %749 = vmatprep.subr.mxu0 0.0
        %750 = vmatpush2.msra.mxu0 0.0
        %751 = vmatprep.subr.mxu0 0.0
        %752 = vmatpush2.msra.mxu0 0.0
        %753 = vmatprep.subr.mxu0 0.0
        %754 = vmatpush2.msra.mxu0 0.0
        %755 = vmatprep.subr.mxu0 0.0
        %756 = vmatpush2.msra.mxu0 0.0
        %757 = vmatprep.subr.mxu0 0.0
        %758 = vmatpush2.msra.mxu0 0.0
        %759 = vmatprep.mubr.f32.mxu0 0.0
        %760 = vmatmul.mubr.f32.gmra.mxu0 %v690
        %v761 = vpop.f32.mrf.mxu0
        %v762 = vadd.f32 %v681, %v761
        %v763 = vpop.f32.mrf.mxu0
        %v764 = vadd.f32 %v681, %v763
        %765 = vmatprep.mubr.f32.mxu0 0.0
        %766 = vmatmul.mubr.f32.gmra.mxu0 %v693
        %v767 = vpop.f32.mrf.mxu0
        %v768 = vadd.f32 %v686, %v767
        %v769 = vpop.f32.mrf.mxu0
        %v770 = vadd.f32 %v686, %v769
        %771 = vdwg.mxu0
        %v772 = vtanh.pop %v762
        %v773 = vtanh.pop %v764
        %v774 = vtanh.pop %v768
        %v775 = vtanh.pop %v770
        %v776 = vld [vmem:[%s5] sm:$0xff]
        %v777 = vld [vmem:[%s5 + $0x8] sm:$0xff]
        %v778 = vld [vmem:[%s6] sm:$0xff]
        %v779 = vld [vmem:[%s6 + $0x8] sm:$0xff]
        %781 = vset.pattern.permute.xlu0 0
        %782 = vperm.xlu0 %781, %v778
        %v783 = vpop.permute.xlu0 %782
        %786 = vset.pattern.permute.xlu0 0
        %787 = vperm.xlu0 %786, %v779
        %v788 = vpop.permute.xlu0 %787
        %vm790 = vcmask 130048
        %v792 = vsel %vm790, %v776, 0
        %v795 = vsel %vm790, %v777, 0
        %797 = vmatprep.subr.mxu0 0.0
        %798 = vmatpush1.msra.mxu0 0.0
        %799 = vmatprep.subr.mxu0 0.0
        %800 = vmatpush1.msra.mxu0 0.0
        %801 = vmatprep.subr.mxu0 0.0
        %802 = vmatpush1.msra.mxu0 0.0
        %803 = vmatprep.subr.mxu0 0.0
        %804 = vmatpush1.msra.mxu0 0.0
        %805 = vmatprep.subr.mxu0 0.0
        %806 = vmatpush1.msra.mxu0 0.0
        %807 = vmatprep.subr.mxu0 0.0
        %808 = vmatpush1.msra.mxu0 0.0
        %809 = vmatprep.subr.mxu0 0.0
        %810 = vmatpush1.msra.mxu0 0.0
        %811 = vmatprep.subr.mxu0 0.0
        %812 = vmatpush1.msra.mxu0 0.0
        %813 = vmatprep.subr.mxu0 0.0
        %814 = vmatpush1.msra.mxu0 0.0
        %815 = vmatprep.subr.mxu0 0.0
        %816 = vmatpush1.msra.mxu0 0.0
        %817 = vmatprep.subr.mxu0 0.0
        %818 = vmatpush1.msra.mxu0 0.0
        %819 = vmatprep.subr.mxu0 0.0
        %820 = vmatpush1.msra.mxu0 0.0
        %821 = vmatprep.subr.mxu0 0.0
        %822 = vmatpush1.msra.mxu0 0.0
        %823 = vmatprep.subr.mxu0 0.0
        %824 = vmatpush1.msra.mxu0 0.0
        %825 = vmatprep.subr.mxu0 %v775
        %826 = vmatpush1.msra.mxu0 %v774
        %827 = vmatprep.subr.mxu0 %v773
        %828 = vmatpush1.msra.mxu0 %v772
        %829 = vmatprep.subr.mxu0 0.0
        %830 = vmatpush2.msra.mxu0 0.0
        %831 = vmatprep.subr.mxu0 0.0
        %832 = vmatpush2.msra.mxu0 0.0
        %833 = vmatprep.subr.mxu0 0.0
        %834 = vmatpush2.msra.mxu0 0.0
        %835 = vmatprep.subr.mxu0 0.0
        %836 = vmatpush2.msra.mxu0 0.0
        %837 = vmatprep.subr.mxu0 0.0
        %838 = vmatpush2.msra.mxu0 0.0
        %839 = vmatprep.subr.mxu0 0.0
        %840 = vmatpush2.msra.mxu0 0.0
        %841 = vmatprep.subr.mxu0 0.0
        %842 = vmatpush2.msra.mxu0 0.0
        %843 = vmatprep.subr.mxu0 0.0
        %844 = vmatpush2.msra.mxu0 0.0
        %845 = vmatprep.subr.mxu0 0.0
        %846 = vmatpush2.msra.mxu0 0.0
        %847 = vmatprep.subr.mxu0 0.0
        %848 = vmatpush2.msra.mxu0 0.0
        %849 = vmatprep.subr.mxu0 0.0
        %850 = vmatpush2.msra.mxu0 0.0
        %851 = vmatprep.subr.mxu0 0.0
        %852 = vmatpush2.msra.mxu0 0.0
        %853 = vmatprep.subr.mxu0 0.0
        %854 = vmatpush2.msra.mxu0 0.0
        %855 = vmatprep.subr.mxu0 0.0
        %856 = vmatpush2.msra.mxu0 0.0
        %857 = vmatprep.subr.mxu0 0.0
        %858 = vmatpush2.msra.mxu0 0.0
        %859 = vmatprep.subr.mxu0 0.0
        %860 = vmatpush2.msra.mxu0 0.0
        %861 = vmatprep.mubr.f32.mxu0 0.0
        %862 = vmatmul.mubr.f32.gmra.mxu0 %v792
        %v863 = vpop.f32.mrf.mxu0
        %v864 = vadd.f32 %v783, %v863
        %v865 = vpop.f32.mrf.mxu0
        %v866 = vadd.f32 %v783, %v865
        %867 = vmatprep.mubr.f32.mxu0 0.0
        %868 = vmatmul.mubr.f32.gmra.mxu0 %v795
        %v869 = vpop.f32.mrf.mxu0
        %v870 = vadd.f32 %v788, %v869
        %v871 = vpop.f32.mrf.mxu0
        %v872 = vadd.f32 %v788, %v871
        %873 = vdwg.mxu0
        %v874 = vtanh.pop %v864
        %v875 = vtanh.pop %v866
        %v876 = vtanh.pop %v870
        %v877 = vtanh.pop %v872
        %v878 = vld [vmem:[%s7] sm:$0xff]
        %v879 = vld [vmem:[%s8] sm:$0xff]
        %881 = vset.pattern.permute.xlu0 0
        %882 = vperm.xlu0 %881, %v879
        %v883 = vpop.permute.xlu0 %882
        %v886 = vsel %vm790, %v878, 0
        %888 = vmatprep.subr.mxu0 0.0
        %889 = vmatpush1.msra.mxu0 0.0
        %890 = vmatprep.subr.mxu0 0.0
        %891 = vmatpush1.msra.mxu0 0.0
        %892 = vmatprep.subr.mxu0 0.0
        %893 = vmatpush1.msra.mxu0 0.0
        %894 = vmatprep.subr.mxu0 0.0
        %895 = vmatpush1.msra.mxu0 0.0
        %896 = vmatprep.subr.mxu0 0.0
        %897 = vmatpush1.msra.mxu0 0.0
        %898 = vmatprep.subr.mxu0 0.0
        %899 = vmatpush1.msra.mxu0 0.0
        %900 = vmatprep.subr.mxu0 0.0
        %901 = vmatpush1.msra.mxu0 0.0
        %902 = vmatprep.subr.mxu0 0.0
        %903 = vmatpush1.msra.mxu0 0.0
        %904 = vmatprep.subr.mxu0 0.0
        %905 = vmatpush1.msra.mxu0 0.0
        %906 = vmatprep.subr.mxu0 0.0
        %907 = vmatpush1.msra.mxu0 0.0
        %908 = vmatprep.subr.mxu0 0.0
        %909 = vmatpush1.msra.mxu0 0.0
        %910 = vmatprep.subr.mxu0 0.0
        %911 = vmatpush1.msra.mxu0 0.0
        %912 = vmatprep.subr.mxu0 0.0
        %913 = vmatpush1.msra.mxu0 0.0
        %914 = vmatprep.subr.mxu0 0.0
        %915 = vmatpush1.msra.mxu0 0.0
        %916 = vmatprep.subr.mxu0 %v877
        %917 = vmatpush1.msra.mxu0 %v876
        %918 = vmatprep.subr.mxu0 %v875
        %919 = vmatpush1.msra.mxu0 %v874
        %920 = vmatprep.subr.mxu0 0.0
        %921 = vmatpush2.msra.mxu0 0.0
        %922 = vmatprep.subr.mxu0 0.0
        %923 = vmatpush2.msra.mxu0 0.0
        %924 = vmatprep.subr.mxu0 0.0
        %925 = vmatpush2.msra.mxu0 0.0
        %926 = vmatprep.subr.mxu0 0.0
        %927 = vmatpush2.msra.mxu0 0.0
        %928 = vmatprep.subr.mxu0 0.0
        %929 = vmatpush2.msra.mxu0 0.0
        %930 = vmatprep.subr.mxu0 0.0
        %931 = vmatpush2.msra.mxu0 0.0
        %932 = vmatprep.subr.mxu0 0.0
        %933 = vmatpush2.msra.mxu0 0.0
        %934 = vmatprep.subr.mxu0 0.0
        %935 = vmatpush2.msra.mxu0 0.0
        %936 = vmatprep.subr.mxu0 0.0
        %937 = vmatpush2.msra.mxu0 0.0
        %938 = vmatprep.subr.mxu0 0.0
        %939 = vmatpush2.msra.mxu0 0.0
        %940 = vmatprep.subr.mxu0 0.0
        %941 = vmatpush2.msra.mxu0 0.0
        %942 = vmatprep.subr.mxu0 0.0
        %943 = vmatpush2.msra.mxu0 0.0
        %944 = vmatprep.subr.mxu0 0.0
        %945 = vmatpush2.msra.mxu0 0.0
        %946 = vmatprep.subr.mxu0 0.0
        %947 = vmatpush2.msra.mxu0 0.0
        %948 = vmatprep.subr.mxu0 0.0
        %949 = vmatpush2.msra.mxu0 0.0
        %950 = vmatprep.subr.mxu0 0.0
        %951 = vmatpush2.msra.mxu0 0.0
        %952 = vmatprep.mubr.f32.mxu0 0.0
        %953 = vmatmul.mubr.f32.gmra.mxu0 %v886
        %v954 = vpop.f32.mrf.mxu0
        %v955 = vadd.f32 %v883, %v954
        %v956 = vpop.f32.mrf.mxu0
        %v957 = vadd.f32 %v883, %v956
        %958 = vdwg.mxu0
        %959 = vxpose.xlu0.b32.start [1/16] %v955, 128
        %960 = vxpose.xlu0.b32.cont [2/16] 0.0, 128
        %961 = vxpose.xlu0.b32.cont [3/16] 0.0, 128
        %962 = vxpose.xlu0.b32.cont [4/16] 0.0, 128
        %963 = vxpose.xlu0.b32.cont [5/16] 0.0, 128
        %964 = vxpose.xlu0.b32.cont [6/16] 0.0, 128
        %965 = vxpose.xlu0.b32.cont [7/16] 0.0, 128
        %966 = vxpose.xlu0.b32.cont [8/16] 0.0, 128
        %967 = vxpose.xlu0.b32.cont [9/16] 0.0, 128
        %968 = vxpose.xlu0.b32.cont [10/16] 0.0, 128
        %969 = vxpose.xlu0.b32.cont [11/16] 0.0, 128
        %970 = vxpose.xlu0.b32.cont [12/16] 0.0, 128
        %971 = vxpose.xlu0.b32.cont [13/16] 0.0, 128
        %972 = vxpose.xlu0.b32.cont [14/16] 0.0, 128
        %973 = vxpose.xlu0.b32.cont [15/16] 0.0, 128
        %974 = vxpose.xlu0.b32.end [16/16] 0.0, 128
        %v975 = vpop.trf.xlu0
        %v976 = vpop.trf.xlu0
        %v977 = vpop.trf.xlu0
        %v978 = vpop.trf.xlu0
        %v979 = vpop.trf.xlu0
        %v980 = vpop.trf.xlu0
        %v981 = vpop.trf.xlu0
        %v982 = vpop.trf.xlu0
        %v983 = vpop.trf.xlu0
        %v984 = vpop.trf.xlu0
        %v985 = vpop.trf.xlu0
        %v986 = vpop.trf.xlu0
        %v987 = vpop.trf.xlu0
        %v988 = vpop.trf.xlu0
        %v989 = vpop.trf.xlu0
        %v990 = vpop.trf.xlu0
        %991 = vxpose.xlu0.b32.start [1/16] %v957, 128
        %992 = vxpose.xlu0.b32.cont [2/16] 0.0, 128
        %993 = vxpose.xlu0.b32.cont [3/16] 0.0, 128
        %994 = vxpose.xlu0.b32.cont [4/16] 0.0, 128
        %995 = vxpose.xlu0.b32.cont [5/16] 0.0, 128
        %996 = vxpose.xlu0.b32.cont [6/16] 0.0, 128
        %997 = vxpose.xlu0.b32.cont [7/16] 0.0, 128
        %998 = vxpose.xlu0.b32.cont [8/16] 0.0, 128
        %999 = vxpose.xlu0.b32.cont [9/16] 0.0, 128
        %1000 = vxpose.xlu0.b32.cont [10/16] 0.0, 128
        %1001 = vxpose.xlu0.b32.cont [11/16] 0.0, 128
        %1002 = vxpose.xlu0.b32.cont [12/16] 0.0, 128
        %1003 = vxpose.xlu0.b32.cont [13/16] 0.0, 128
        %1004 = vxpose.xlu0.b32.cont [14/16] 0.0, 128
        %1005 = vxpose.xlu0.b32.cont [15/16] 0.0, 128
        %1006 = vxpose.xlu0.b32.end [16/16] 0.0, 128
        %v1007 = vpop.trf.xlu0
        %v1008 = vpop.trf.xlu0
        %v1009 = vpop.trf.xlu0
        %v1010 = vpop.trf.xlu0
        %v1011 = vpop.trf.xlu0
        %v1012 = vpop.trf.xlu0
        %v1013 = vpop.trf.xlu0
        %v1014 = vpop.trf.xlu0
        %v1015 = vpop.trf.xlu0
        %v1016 = vpop.trf.xlu0
        %v1017 = vpop.trf.xlu0
        %v1018 = vpop.trf.xlu0
        %v1019 = vpop.trf.xlu0
        %v1020 = vpop.trf.xlu0
        %v1021 = vpop.trf.xlu0
        %v1022 = vpop.trf.xlu0
        %vm1023 = vcmask 15360
        %1024 = vst.msk [vmem:[%s334] sm:$0xff] %vm1023, %v975
        %1025 = vst.msk [vmem:[%s334 + $0x8] sm:$0xff] %vm1023, %v976
        %1026 = vst.msk [vmem:[%s334 + $0x10] sm:$0xff] %vm1023, %v977
        %1027 = vst.msk [vmem:[%s334 + $0x18] sm:$0xff] %vm1023, %v978
        %1028 = vst.msk [vmem:[%s334 + $0x20] sm:$0xff] %vm1023, %v979
        %1029 = vst.msk [vmem:[%s334 + $0x28] sm:$0xff] %vm1023, %v980
        %1030 = vst.msk [vmem:[%s334 + $0x30] sm:$0xff] %vm1023, %v981
        %1031 = vst.msk [vmem:[%s334 + $0x38] sm:$0xff] %vm1023, %v982
        %1032 = vst.msk [vmem:[%s334 + $0x40] sm:$0xff] %vm1023, %v983
        %1033 = vst.msk [vmem:[%s334 + $0x48] sm:$0xff] %vm1023, %v984
        %1034 = vst.msk [vmem:[%s334 + $0x50] sm:$0xff] %vm1023, %v985
        %1035 = vst.msk [vmem:[%s334 + $0x58] sm:$0xff] %vm1023, %v986
        %1036 = vst.msk [vmem:[%s334 + $0x60] sm:$0xff] %vm1023, %v987
        %1037 = vst.msk [vmem:[%s334 + $0x68] sm:$0xff] %vm1023, %v988
        %1038 = vst.msk [vmem:[%s334 + $0x70] sm:$0xff] %vm1023, %v989
        %1039 = vst.msk [vmem:[%s334 + $0x78] sm:$0xff] %vm1023, %v990
        %1040 = vst.msk [vmem:[%s334 + $0x80] sm:$0xff] %vm1023, %v1007
        %1041 = vst.msk [vmem:[%s334 + $0x88] sm:$0xff] %vm1023, %v1008
        %1042 = vst.msk [vmem:[%s334 + $0x90] sm:$0xff] %vm1023, %v1009
        %1043 = vst.msk [vmem:[%s334 + $0x98] sm:$0xff] %vm1023, %v1010
        %1044 = vst.msk [vmem:[%s334 + $0xa0] sm:$0xff] %vm1023, %v1011
        %1045 = vst.msk [vmem:[%s334 + $0xa8] sm:$0xff] %vm1023, %v1012
        %1046 = vst.msk [vmem:[%s334 + $0xb0] sm:$0xff] %vm1023, %v1013
        %1047 = vst.msk [vmem:[%s334 + $0xb8] sm:$0xff] %vm1023, %v1014
        %1048 = vst.msk [vmem:[%s334 + $0xc0] sm:$0xff] %vm1023, %v1015
        %1049 = vst.msk [vmem:[%s334 + $0xc8] sm:$0xff] %vm1023, %v1016
        %1050 = vst.msk [vmem:[%s334 + $0xd0] sm:$0xff] %vm1023, %v1017
        %1051 = vst.msk [vmem:[%s334 + $0xd8] sm:$0xff] %vm1023, %v1018
        %1052 = vst.msk [vmem:[%s334 + $0xe0] sm:$0xff] %vm1023, %v1019
        %1053 = vst.msk [vmem:[%s334 + $0xe8] sm:$0xff] %vm1023, %v1020
        %1054 = vst.msk [vmem:[%s334 + $0xf0] sm:$0xff] %vm1023, %v1021
        %1055 = vst.msk [vmem:[%s334 + $0xf8] sm:$0xff] %vm1023, %v1022
        %s1056 = sand.u32 %s222, 1
        %s1057 = sand.u32 %s222, 1
        %s1058 = smul.addr %s1057, 256
        %s1059 = scalar_lea.vmem [#allocation2], %s1058
        // Predicated region
        $region57: #{controller_forward.1} parent=55 // pred_check
          %p1060 = pneg %p232
        $region58: #{controller_forward.1} parent=55 // pred_check_branch
          %1062 = sbr.rel (%p1060) target = $region60
        $region59: #{controller_forward.1} parent=55 // pred_region
          %s1063 = smul.u32 32, %s20
          %s1064 = ssub.s32 38, %s1063
          %p1065 = scmp.lt.s32.totalorder %s1064, 32
          %s1066 = scalar_select %p1065, %s1064, 32
          %s1067 = smul.u32 128, %s1066
          %p1068 = scmp.ne.s32.totalorder 0, %s1067
          %s1069 = smul.addr %s1063, 8
          %s1070 = scalar_lea.vmem %s9, %s1069
          // Predicated region
          $region61: #{controller_forward.1} parent=59 // pred_check
            %p1071 = pneg %p1068
          $region62: #{controller_forward.1} parent=59 // pred_check_branch
            %1073 = sbr.rel (%p1071) target = $region64
          $region63: #{controller_forward.1} parent=59 // pred_region
            // Predicated region
            $region65: #{controller_forward.1} parent=63 // pred_check
              _
            $region66: #{controller_forward.1} parent=63 // pred_check_branch
              %1075 = sbr.rel (0) target = $region68
            $region67: #{controller_forward.1} parent=63 // pred_region
              // Predicated region
              $region87: #{controller_forward.1} parent=67 // pred_check
                _
              $region88: #{controller_forward.1} parent=67 // pred_check_branch
                %1187 = sbr.rel (0) target = $region90
              $region89: #{controller_forward.1} parent=67 // pred_region
                %s1188 = sshrl.u32 %s1066, 5
                // While loop
                $region91: #{controller_forward.1} parent=89 // loop_pre_header
                  _
                $region92: #{controller_forward.1} parent=89 // loop_header
                  %s1190 = sphi 0, %s1192
                  %p1191 = scmp.ge.s32.totalorder %s1190, %s1188
                  %s1195 = sphi 0, %s1264
                  %s1196 = sphi %s1059, %s1267
                  %s1197 = sphi %s1070, %s1268
                $region93: #{controller_forward.1} parent=89 // loop_header_branch
                  %1194 = sbr.rel (%p1191) target = $region97
                $region94: #{controller_forward.1} parent=89 // loop_body
                  %v1198 = vld [vmem:[%s1196] sm:$0xff]
                  %1199 = vst [vmem:[%s1197] sm:$0xff] %v1198
                  %v1200 = vld [vmem:[%s1196 + $0x8] sm:$0xff]
                  %1201 = vst [vmem:[%s1197 + $0x8] sm:$0xff] %v1200
                  %v1202 = vld [vmem:[%s1196 + $0x10] sm:$0xff]
                  %1203 = vst [vmem:[%s1197 + $0x10] sm:$0xff] %v1202
                  %v1204 = vld [vmem:[%s1196 + $0x18] sm:$0xff]
                  %1205 = vst [vmem:[%s1197 + $0x18] sm:$0xff] %v1204
                  %v1206 = vld [vmem:[%s1196 + $0x20] sm:$0xff]
                  %1207 = vst [vmem:[%s1197 + $0x20] sm:$0xff] %v1206
                  %v1208 = vld [vmem:[%s1196 + $0x28] sm:$0xff]
                  %1209 = vst [vmem:[%s1197 + $0x28] sm:$0xff] %v1208
                  %v1210 = vld [vmem:[%s1196 + $0x30] sm:$0xff]
                  %1211 = vst [vmem:[%s1197 + $0x30] sm:$0xff] %v1210
                  %v1212 = vld [vmem:[%s1196 + $0x38] sm:$0xff]
                  %1213 = vst [vmem:[%s1197 + $0x38] sm:$0xff] %v1212
                  %v1214 = vld [vmem:[%s1196 + $0x40] sm:$0xff]
                  %1215 = vst [vmem:[%s1197 + $0x40] sm:$0xff] %v1214
                  %v1216 = vld [vmem:[%s1196 + $0x48] sm:$0xff]
                  %1217 = vst [vmem:[%s1197 + $0x48] sm:$0xff] %v1216
                  %v1218 = vld [vmem:[%s1196 + $0x50] sm:$0xff]
                  %1219 = vst [vmem:[%s1197 + $0x50] sm:$0xff] %v1218
                  %v1220 = vld [vmem:[%s1196 + $0x58] sm:$0xff]
                  %1221 = vst [vmem:[%s1197 + $0x58] sm:$0xff] %v1220
                  %v1222 = vld [vmem:[%s1196 + $0x60] sm:$0xff]
                  %1223 = vst [vmem:[%s1197 + $0x60] sm:$0xff] %v1222
                  %v1224 = vld [vmem:[%s1196 + $0x68] sm:$0xff]
                  %1225 = vst [vmem:[%s1197 + $0x68] sm:$0xff] %v1224
                  %v1226 = vld [vmem:[%s1196 + $0x70] sm:$0xff]
                  %1227 = vst [vmem:[%s1197 + $0x70] sm:$0xff] %v1226
                  %v1228 = vld [vmem:[%s1196 + $0x78] sm:$0xff]
                  %1229 = vst [vmem:[%s1197 + $0x78] sm:$0xff] %v1228
                  %v1230 = vld [vmem:[%s1196 + $0x80] sm:$0xff]
                  %1231 = vst [vmem:[%s1197 + $0x80] sm:$0xff] %v1230
                  %v1232 = vld [vmem:[%s1196 + $0x88] sm:$0xff]
                  %1233 = vst [vmem:[%s1197 + $0x88] sm:$0xff] %v1232
                  %v1234 = vld [vmem:[%s1196 + $0x90] sm:$0xff]
                  %1235 = vst [vmem:[%s1197 + $0x90] sm:$0xff] %v1234
                  %v1236 = vld [vmem:[%s1196 + $0x98] sm:$0xff]
                  %1237 = vst [vmem:[%s1197 + $0x98] sm:$0xff] %v1236
                  %v1238 = vld [vmem:[%s1196 + $0xa0] sm:$0xff]
                  %1239 = vst [vmem:[%s1197 + $0xa0] sm:$0xff] %v1238
                  %v1240 = vld [vmem:[%s1196 + $0xa8] sm:$0xff]
                  %1241 = vst [vmem:[%s1197 + $0xa8] sm:$0xff] %v1240
                  %v1242 = vld [vmem:[%s1196 + $0xb0] sm:$0xff]
                  %1243 = vst [vmem:[%s1197 + $0xb0] sm:$0xff] %v1242
                  %v1244 = vld [vmem:[%s1196 + $0xb8] sm:$0xff]
                  %1245 = vst [vmem:[%s1197 + $0xb8] sm:$0xff] %v1244
                  %v1246 = vld [vmem:[%s1196 + $0xc0] sm:$0xff]
                  %1247 = vst [vmem:[%s1197 + $0xc0] sm:$0xff] %v1246
                  %v1248 = vld [vmem:[%s1196 + $0xc8] sm:$0xff]
                  %1249 = vst [vmem:[%s1197 + $0xc8] sm:$0xff] %v1248
                  %v1250 = vld [vmem:[%s1196 + $0xd0] sm:$0xff]
                  %1251 = vst [vmem:[%s1197 + $0xd0] sm:$0xff] %v1250
                  %v1252 = vld [vmem:[%s1196 + $0xd8] sm:$0xff]
                  %1253 = vst [vmem:[%s1197 + $0xd8] sm:$0xff] %v1252
                  %v1254 = vld [vmem:[%s1196 + $0xe0] sm:$0xff]
                  %1255 = vst [vmem:[%s1197 + $0xe0] sm:$0xff] %v1254
                  %v1256 = vld [vmem:[%s1196 + $0xe8] sm:$0xff]
                  %1257 = vst [vmem:[%s1197 + $0xe8] sm:$0xff] %v1256
                  %v1258 = vld [vmem:[%s1196 + $0xf0] sm:$0xff]
                  %1259 = vst [vmem:[%s1197 + $0xf0] sm:$0xff] %v1258
                  %v1260 = vld [vmem:[%s1196 + $0xf8] sm:$0xff]
                  %1261 = vst [vmem:[%s1197 + $0xf8] sm:$0xff] %v1260
                  %s1262 = sadd.s32 1, %s1195
                  %p1263 = scmp.ge.s32.totalorder %s1262, %s1188
                  %s1264 = scalar_select %p1263, 0, %s1262
                  %s1265 = smul.u32 %s1264, 256
                  %s1266 = smul.u32 %s1264, 256
                  %s1267 = scalar_lea.vmem %s1059, %s1265 [#allocation2]
                  %s1268 = scalar_lea.vmem %s1070, %s1266
                $region95: #{controller_forward.1} parent=89 // loop_footer
                  %s1192 = sadd.s32 %s1190, 1
                $region96: #{controller_forward.1} parent=89 // loop_footer_branch
                  %1189 = sbr.rel target = $region92
                $region97: #{controller_forward.1} parent=89 // loop_exit
                  _
                %s1269 = sshrl.u32 %s1066, 5
                %s1270 = sand.u32 %s1066, 31
                %s1271 = smul.u32 %s1269, 32
                %s1272 = smul.u32 8, %s1271
                %s1273 = scalar_lea.vmem %s1059, %s1272 [#allocation2]
                %s1274 = smul.u32 8, %s1271
                %s1275 = scalar_lea.vmem %s1070, %s1274
                // While loop
                $region98: #{controller_forward.1} parent=89 // loop_pre_header
                  _
                $region99: #{controller_forward.1} parent=89 // loop_header
                  %s1277 = sphi 0, %s1279
                  %p1278 = scmp.ge.s32.totalorder %s1277, %s1270
                  %s1282 = sphi 0, %s1289
                  %s1283 = sphi %s1273, %s1292
                  %s1284 = sphi %s1275, %s1293
                $region100: #{controller_forward.1} parent=89 // loop_header_branch
                  %1281 = sbr.rel (%p1278) target = $region104
                $region101: #{controller_forward.1} parent=89 // loop_body
                  %v1285 = vld [vmem:[%s1283] sm:$0xff]
                  %1286 = vst [vmem:[%s1284] sm:$0xff] %v1285
                  %s1287 = sadd.s32 1, %s1282
                  %p1288 = scmp.ge.s32.totalorder %s1287, %s1270
                  %s1289 = scalar_select %p1288, 0, %s1287
                  %s1290 = smul.u32 %s1289, 8
                  %s1291 = smul.u32 %s1289, 8
                  %s1292 = scalar_lea.vmem %s1273, %s1290 [#allocation2]
                  %s1293 = scalar_lea.vmem %s1275, %s1291
                $region102: #{controller_forward.1} parent=89 // loop_footer
                  %s1279 = sadd.s32 %s1277, 1
                $region103: #{controller_forward.1} parent=89 // loop_footer_branch
                  %1276 = sbr.rel target = $region99
                $region104: #{controller_forward.1} parent=89 // loop_exit
                  _
              $region90: #{controller_forward.1} parent=67 // pred_fallthru
                _
              // Predicated region
              $region105: #{controller_forward.1} parent=67 // pred_check
                _
              $region106: #{controller_forward.1} parent=67 // pred_check_branch
                %1295 = sbr.rel target = $region108
              $region107: #{controller_forward.1} parent=67 // pred_region
                _
              $region108: #{controller_forward.1} parent=67 // pred_fallthru
                _
            $region68: #{controller_forward.1} parent=63 // pred_fallthru
              _
            // Predicated region
            $region69: #{controller_forward.1} parent=63 // pred_check
              _
            $region70: #{controller_forward.1} parent=63 // pred_check_branch
              %1077 = sbr.rel target = $region72
            $region71: #{controller_forward.1} parent=63 // pred_region
              %s1079 = ssub.s32 256, 1
              %s1080 = sshrl.u32 %s1066, 5
              // While loop
              $region73: #{controller_forward.1} parent=71 // loop_pre_header
                _
              $region74: #{controller_forward.1} parent=71 // loop_header
                %s1082 = sphi 0, %s1084
                %p1083 = scmp.ge.s32.totalorder %s1082, %s1080
                %s1087 = sphi 0, %s1156
                %s1088 = sphi %s1059, %s1159
                %s1089 = sphi %s1070, %s1160
              $region75: #{controller_forward.1} parent=71 // loop_header_branch
                %1086 = sbr.rel (%p1083) target = $region79
              $region76: #{controller_forward.1} parent=71 // loop_body
                %v1090 = vld [vmem:[%s1088] sm:%s1079]
                %1091 = vst [vmem:[%s1089] sm:%s1079] %v1090
                %v1092 = vld [vmem:[%s1088 + $0x8] sm:%s1079]
                %1093 = vst [vmem:[%s1089 + $0x8] sm:%s1079] %v1092
                %v1094 = vld [vmem:[%s1088 + $0x10] sm:%s1079]
                %1095 = vst [vmem:[%s1089 + $0x10] sm:%s1079] %v1094
                %v1096 = vld [vmem:[%s1088 + $0x18] sm:%s1079]
                %1097 = vst [vmem:[%s1089 + $0x18] sm:%s1079] %v1096
                %v1098 = vld [vmem:[%s1088 + $0x20] sm:%s1079]
                %1099 = vst [vmem:[%s1089 + $0x20] sm:%s1079] %v1098
                %v1100 = vld [vmem:[%s1088 + $0x28] sm:%s1079]
                %1101 = vst [vmem:[%s1089 + $0x28] sm:%s1079] %v1100
                %v1102 = vld [vmem:[%s1088 + $0x30] sm:%s1079]
                %1103 = vst [vmem:[%s1089 + $0x30] sm:%s1079] %v1102
                %v1104 = vld [vmem:[%s1088 + $0x38] sm:%s1079]
                %1105 = vst [vmem:[%s1089 + $0x38] sm:%s1079] %v1104
                %v1106 = vld [vmem:[%s1088 + $0x40] sm:%s1079]
                %1107 = vst [vmem:[%s1089 + $0x40] sm:%s1079] %v1106
                %v1108 = vld [vmem:[%s1088 + $0x48] sm:%s1079]
                %1109 = vst [vmem:[%s1089 + $0x48] sm:%s1079] %v1108
                %v1110 = vld [vmem:[%s1088 + $0x50] sm:%s1079]
                %1111 = vst [vmem:[%s1089 + $0x50] sm:%s1079] %v1110
                %v1112 = vld [vmem:[%s1088 + $0x58] sm:%s1079]
                %1113 = vst [vmem:[%s1089 + $0x58] sm:%s1079] %v1112
                %v1114 = vld [vmem:[%s1088 + $0x60] sm:%s1079]
                %1115 = vst [vmem:[%s1089 + $0x60] sm:%s1079] %v1114
                %v1116 = vld [vmem:[%s1088 + $0x68] sm:%s1079]
                %1117 = vst [vmem:[%s1089 + $0x68] sm:%s1079] %v1116
                %v1118 = vld [vmem:[%s1088 + $0x70] sm:%s1079]
                %1119 = vst [vmem:[%s1089 + $0x70] sm:%s1079] %v1118
                %v1120 = vld [vmem:[%s1088 + $0x78] sm:%s1079]
                %1121 = vst [vmem:[%s1089 + $0x78] sm:%s1079] %v1120
                %v1122 = vld [vmem:[%s1088 + $0x80] sm:%s1079]
                %1123 = vst [vmem:[%s1089 + $0x80] sm:%s1079] %v1122
                %v1124 = vld [vmem:[%s1088 + $0x88] sm:%s1079]
                %1125 = vst [vmem:[%s1089 + $0x88] sm:%s1079] %v1124
                %v1126 = vld [vmem:[%s1088 + $0x90] sm:%s1079]
                %1127 = vst [vmem:[%s1089 + $0x90] sm:%s1079] %v1126
                %v1128 = vld [vmem:[%s1088 + $0x98] sm:%s1079]
                %1129 = vst [vmem:[%s1089 + $0x98] sm:%s1079] %v1128
                %v1130 = vld [vmem:[%s1088 + $0xa0] sm:%s1079]
                %1131 = vst [vmem:[%s1089 + $0xa0] sm:%s1079] %v1130
                %v1132 = vld [vmem:[%s1088 + $0xa8] sm:%s1079]
                %1133 = vst [vmem:[%s1089 + $0xa8] sm:%s1079] %v1132
                %v1134 = vld [vmem:[%s1088 + $0xb0] sm:%s1079]
                %1135 = vst [vmem:[%s1089 + $0xb0] sm:%s1079] %v1134
                %v1136 = vld [vmem:[%s1088 + $0xb8] sm:%s1079]
                %1137 = vst [vmem:[%s1089 + $0xb8] sm:%s1079] %v1136
                %v1138 = vld [vmem:[%s1088 + $0xc0] sm:%s1079]
                %1139 = vst [vmem:[%s1089 + $0xc0] sm:%s1079] %v1138
                %v1140 = vld [vmem:[%s1088 + $0xc8] sm:%s1079]
                %1141 = vst [vmem:[%s1089 + $0xc8] sm:%s1079] %v1140
                %v1142 = vld [vmem:[%s1088 + $0xd0] sm:%s1079]
                %1143 = vst [vmem:[%s1089 + $0xd0] sm:%s1079] %v1142
                %v1144 = vld [vmem:[%s1088 + $0xd8] sm:%s1079]
                %1145 = vst [vmem:[%s1089 + $0xd8] sm:%s1079] %v1144
                %v1146 = vld [vmem:[%s1088 + $0xe0] sm:%s1079]
                %1147 = vst [vmem:[%s1089 + $0xe0] sm:%s1079] %v1146
                %v1148 = vld [vmem:[%s1088 + $0xe8] sm:%s1079]
                %1149 = vst [vmem:[%s1089 + $0xe8] sm:%s1079] %v1148
                %v1150 = vld [vmem:[%s1088 + $0xf0] sm:%s1079]
                %1151 = vst [vmem:[%s1089 + $0xf0] sm:%s1079] %v1150
                %v1152 = vld [vmem:[%s1088 + $0xf8] sm:%s1079]
                %1153 = vst [vmem:[%s1089 + $0xf8] sm:%s1079] %v1152
                %s1154 = sadd.s32 1, %s1087
                %p1155 = scmp.ge.s32.totalorder %s1154, %s1080
                %s1156 = scalar_select %p1155, 0, %s1154
                %s1157 = smul.u32 %s1156, 256
                %s1158 = smul.u32 %s1156, 256
                %s1159 = scalar_lea.vmem %s1059, %s1157 [#allocation2]
                %s1160 = scalar_lea.vmem %s1070, %s1158
              $region77: #{controller_forward.1} parent=71 // loop_footer
                %s1084 = sadd.s32 %s1082, 1
              $region78: #{controller_forward.1} parent=71 // loop_footer_branch
                %1081 = sbr.rel target = $region74
              $region79: #{controller_forward.1} parent=71 // loop_exit
                _
              %s1161 = sshrl.u32 %s1066, 5
              %s1162 = sand.u32 %s1066, 31
              %s1163 = smul.u32 %s1161, 32
              %s1164 = smul.u32 8, %s1163
              %s1165 = scalar_lea.vmem %s1059, %s1164 [#allocation2]
              %s1166 = smul.u32 8, %s1163
              %s1167 = scalar_lea.vmem %s1070, %s1166
              // While loop
              $region80: #{controller_forward.1} parent=71 // loop_pre_header
                _
              $region81: #{controller_forward.1} parent=71 // loop_header
                %s1169 = sphi 0, %s1171
                %p1170 = scmp.ge.s32.totalorder %s1169, %s1162
                %s1174 = sphi 0, %s1181
                %s1175 = sphi %s1165, %s1184
                %s1176 = sphi %s1167, %s1185
              $region82: #{controller_forward.1} parent=71 // loop_header_branch
                %1173 = sbr.rel (%p1170) target = $region86
              $region83: #{controller_forward.1} parent=71 // loop_body
                %v1177 = vld [vmem:[%s1175] sm:%s1079]
                %1178 = vst [vmem:[%s1176] sm:%s1079] %v1177
                %s1179 = sadd.s32 1, %s1174
                %p1180 = scmp.ge.s32.totalorder %s1179, %s1162
                %s1181 = scalar_select %p1180, 0, %s1179
                %s1182 = smul.u32 %s1181, 8
                %s1183 = smul.u32 %s1181, 8
                %s1184 = scalar_lea.vmem %s1165, %s1182 [#allocation2]
                %s1185 = scalar_lea.vmem %s1167, %s1183
              $region84: #{controller_forward.1} parent=71 // loop_footer
                %s1171 = sadd.s32 %s1169, 1
              $region85: #{controller_forward.1} parent=71 // loop_footer_branch
                %1168 = sbr.rel target = $region81
              $region86: #{controller_forward.1} parent=71 // loop_exit
                _
            $region72: #{controller_forward.1} parent=63 // pred_fallthru
              _
          $region64: #{controller_forward.1} parent=59 // pred_fallthru
            _
          %1296 = vnop
        $region60: #{controller_forward.1} parent=55 // pred_fallthru
          _
      $region56: #{controller_forward.1} parent=5 // pred_fallthru
        _
      %p1297 = scmp.le.s32.totalorder 2, %s15
      // Predicated region
      $region109: #{controller_forward.1} parent=5 // pred_check
        %p1298 = pneg %p1297
      $region110: #{controller_forward.1} parent=5 // pred_check_branch
        %1300 = sbr.rel (%p1298) target = $region112
      $region111: #{controller_forward.1} parent=5 // pred_region
        %s1301 = ssub.s32 %s15, 2
        // Predicated region
        $region113: #{controller_forward.1} parent=111 // pred_check
          %p1302 = pneg %p238
        $region114: #{controller_forward.1} parent=111 // pred_check_branch
          %1304 = sbr.rel (%p1302) target = $region116
        $region115: #{controller_forward.1} parent=111 // pred_region
          %s1305 = sand.u32 %s223, 1
          %s1306 = sand.u32 %s223, 1
          %s1307 = smul.addr %s1306, 256
          %s1308 = scalar_lea.vmem [#allocation2], %s1307
        $region116: #{controller_forward.1} parent=111 // pred_fallthru
          _
      $region112: #{controller_forward.1} parent=5 // pred_fallthru
        _
    $region6: #{controller_forward.1} parent=1 // loop_footer
      %s19 = sadd.s32 1, %s15
    $region7: #{controller_forward.1} parent=1 // loop_footer_branch
      %14 = sbr.rel target = $region3
    $region8: #{controller_forward.1} parent=1 // loop_exit
      _

</llo_original>
